<compile_context>
chip_gen: v5e
topology: v5e:2x2
jax: 0.10.0
libtpu: 0.0.40
codegen_flags: <defaults>
</compile_context>

<pallas_src>
import jax
import jax.numpy as jnp
from jax.experimental import pallas as pl
from jax.experimental.pallas import tpu as pltpu

_LANE = 128
_SUBLANE = 8


def _round_up(x: int, m: int) -> int:
    return ((x + m - 1) // m) * m


def _chip_info():
    """Best-effort hardware introspection: (use_bf16_act, is_v7, vmem_capacity_bytes)."""
    kind = ""
    try:
        kind = jax.devices()[0].device_kind.lower()
    except Exception:
        pass
    is_v7 = "v7" in kind
    # bf16 VPU/EUP path exists on v6e and later; v5e (and unknown) keeps f32 math.
    use_bf16_act = ("v6" in kind) or is_v7
    try:
        vmem_cap = int(pltpu.get_tpu_info().vmem_capacity_bytes)
    except Exception:
        vmem_cap = (64 << 20) if is_v7 else (128 << 20)
    return use_bf16_act, is_v7, vmem_cap


def _make_mean_kernel(n_layers: int, bf16_act: bool):
    """mean = MLP(obs) for one (tb, ob_dim) batch tile.

    Ref layout: (obs_ref, W0, b0, ..., W_out, b_out, mean_ref).
    Weights bf16 (MXU fast path); activations bf16; accumulation f32.
    """

    def kernel(obs_ref, *refs):
        mean_ref = refs[-1]
        p = refs[:-1]

        x = obs_ref[...]                       # (tb, ob_dim) bf16 — no layer-0 cast
        idx = 0
        for _ in range(n_layers):
            w = p[idx][...]                    # (in, size_pad) bf16, VMEM-resident
            b = p[idx + 1][...]                # (1, size_pad) act-dtype, resident
            y = jnp.dot(x, w, preferred_element_type=jnp.float32)
            if bf16_act:
                # v6e/v7x: bf16 VPU/EUP — halves VALU/EUP work + activation footprint.
                x = jnp.tanh(y.astype(jnp.bfloat16) + b)
            else:
                # v5e: no bf16 VPU/EUP path — keep bias-add/tanh in f32.
                x = jnp.tanh(y + b).astype(jnp.bfloat16)
            idx += 2

        w_out = p[idx][...]                    # (size_pad, ac_pad) bf16
        b_out = p[idx + 1][...]                # (1, ac_pad)
        y = jnp.dot(x, w_out, preferred_element_type=jnp.float32)
        mean_ref[...] = (y + b_out.astype(jnp.float32)).astype(mean_ref.dtype)

    return kernel


def mlp_policy_forward(obs, params, logstd, n_layers, block_b=2048):
    """MLPPolicySL forward: returns (mean, std) of the action Normal distribution.

    Args:
      obs:    (B, ob_dim) float32 observations.
      params: list of (W, b) tuples, W: (in, out), b: (1, out), float32.
      logstd: (1, ac_dim) float32.
      n_layers: number of hidden layers.
      block_b: target batch tile size (rows per grid step).
    """
    B, ob_dim = obs.shape
    ac_dim = params[-1][0].shape[1]
    use_bf16_act, is_v7, vmem_cap = _chip_info()
    act_dtype = jnp.bfloat16 if use_bf16_act else jnp.float32

    # ---- Feature dims: keep the obs/contraction dim unpadded (full-dim block);
    #      pad all output feature dims (hidden, action) to 128 lanes. ----
    dims = [params[0][0].shape[0]] + [w.shape[1] for (w, _) in params]
    pdims = [dims[0]] + [_round_up(d, _LANE) for d in dims[1:]]

    padded_params = []
    for li, (w, b) in enumerate(params):
        pin, pout = pdims[li], pdims[li + 1]
        wp = jnp.zeros((pin, pout), jnp.float32).at[: w.shape[0], : w.shape[1]].set(w)
        bp = jnp.zeros((1, pout), jnp.float32).at[:, : b.shape[1]].set(b)
        padded_params.append((wp.astype(jnp.bfloat16), bp.astype(act_dtype)))

    def param_bytes(buffers: int) -> int:
        return buffers * sum(
            int(wp.size) * wp.dtype.itemsize + int(bp.size) * bp.dtype.itemsize
            for wp, bp in padded_params
        )

    # ---- Batch tile: grow toward the VMEM ceiling (fewer, fatter grid steps),
    #      but keep >= 2 steps on v7x so both TensorCores get work. ----
    widest = max(pdims[1:])
    # per-row VMEM: double-buffered bf16 obs + bf16 mean tiles + live x(bf16)/y(f32).
    per_row = 2 * pdims[0] * 2 + 2 * pdims[-1] * 2 + widest * (2 + 4)
    budget = int(0.85 * vmem_cap)
    tb_cap = max(_SUBLANE,
                 ((budget - param_bytes(1)) // max(per_row, 1)) // _SUBLANE * _SUBLANE)

    tb = _round_up(max(1, min(block_b, B, tb_cap)), _SUBLANE)
    if is_v7 and B >= 2 * _SUBLANE:
        tb = min(tb, _round_up(pl.cdiv(B, 2), _SUBLANE))
    tb = max(tb, _SUBLANE)
    Bp = _round_up(B, tb)

    # ---- obs: bf16, batch-padded only (feature dim stays ob_dim). ----
    obs_p = jnp.zeros((Bp, ob_dim), jnp.bfloat16).at[:B, :].set(obs.astype(jnp.bfloat16))

    inputs = [obs_p]
    for wp, bp in padded_params:
        inputs.extend([wp, bp])

    # ---- Advisory cost estimate for the XLA scheduler. ----
    flops = 2 * Bp * sum(pdims[i] * pdims[i + 1] for i in range(len(pdims) - 1))
    transcendentals = Bp * sum(pdims[i + 1] for i in range(n_layers))
    bytes_accessed = Bp * ob_dim * 2 + param_bytes(1) + Bp * pdims[-1] * 2

    def build_call(single_buffer_weights: bool):
        res_kwargs = {"pipeline_mode": pl.Buffered(1)} if single_buffer_weights else {}
        in_specs = [pl.BlockSpec((tb, ob_dim), lambda i: (i, 0))]
        for wp, bp in padded_params:
            in_specs.append(pl.BlockSpec(wp.shape, lambda i: (0, 0), **res_kwargs))
            in_specs.append(pl.BlockSpec(bp.shape, lambda i: (0, 0), **res_kwargs))
        out_spec = pl.BlockSpec((tb, pdims[-1]), lambda i: (i, 0))

        need = param_bytes(1 if single_buffer_weights else 2) + tb * per_row + (2 << 20)
        vmem_limit = max(32 << 20, min(int(1.5 * need), int(0.88 * vmem_cap)))

        return pl.pallas_call(
            _make_mean_kernel(n_layers, use_bf16_act),
            out_shape=jax.ShapeDtypeStruct((Bp, pdims[-1]), jnp.bfloat16),
            grid_spec=pltpu.PrefetchScalarGridSpec(
                num_scalar_prefetch=0,
                grid=(Bp // tb,),
                in_specs=in_specs,
                out_specs=out_spec,
            ),
            compiler_params=pltpu.CompilerParams(
                dimension_semantics=("parallel",),
                vmem_limit_bytes=vmem_limit,
            ),
            cost_estimate=pl.CostEstimate(
                flops=flops,
                transcendentals=transcendentals,
                bytes_accessed=bytes_accessed,
            ),
        )

    try:
        mean_p = build_call(single_buffer_weights=True)(*inputs)
    except Exception:
        # TODO(synk): pl.Buffered(1) single-buffering of the resident weights may be
        # rejected by some jax versions; fall back to default double-buffering.
        mean_p = build_call(single_buffer_weights=False)(*inputs)

    mean = mean_p[:B, :ac_dim].astype(jnp.float32)
    # std depends only on logstd (not on obs): compute/broadcast outside the kernel.
    std = jnp.broadcast_to(jnp.exp(logstd.reshape(1, ac_dim)), (B, ac_dim))
    return mean, std


def init_params(key, ob_dim, ac_dim, n_layers, size):
    """Deterministic synthetic init matching build_mlp's layer shapes."""
    params = []
    dims = [ob_dim] + [size] * n_layers + [ac_dim]
    for i in range(len(dims) - 1):
        fan_in, fan_out = dims[i], dims[i + 1]
        key, wk, bk = jax.random.split(key, 3)
        bound = 1.0 / jnp.sqrt(fan_in)
        w = jax.random.uniform(wk, (fan_in, fan_out), jnp.float32, -bound, bound)
        b = jax.random.uniform(bk, (1, fan_out), jnp.float32, -bound, bound)
        params.append((w, b))
    logstd = jnp.zeros((1, ac_dim), dtype=jnp.float32)  # nn.Parameter(torch.zeros(ac_dim))
    return params, logstd


if __name__ == "__main__":
    # Small shapes consistent with the module: obs (B, ob_dim) -> mean/std (B, ac_dim)
    B, ob_dim, ac_dim, n_layers, size = 8, 16, 8, 2, 32

    key = jax.random.PRNGKey(0)
    key, obs_key = jax.random.split(key)
    obs = jax.random.normal(obs_key, (B, ob_dim), dtype=jnp.float32)

    params, logstd = init_params(key, ob_dim, ac_dim, n_layers, size)

    mean, std = mlp_policy_forward(obs, params, logstd, n_layers)
    jax.block_until_ready((mean, std))

    # Reference in plain JAX (f32 math). The kernel uses bf16 obs/weights/activations
    # with f32 accumulation and a bf16 output store, so tolerance is relaxed.
    x_ref = obs
    for w, b in params[:-1]:
        x_ref = jnp.tanh(x_ref @ w + b)
    mean_ref = x_ref @ params[-1][0] + params[-1][1]
    std_ref = jnp.broadcast_to(jnp.exp(logstd), mean_ref.shape)
    assert mean.shape == (B, ac_dim) and std.shape == (B, ac_dim)
    assert jnp.allclose(mean, mean_ref, atol=3e-2, rtol=3e-2), "mean mismatch"
    assert jnp.allclose(std, std_ref, atol=1e-6), "std mismatch"

    print("KERNEL_OK")
</pallas_src>

<mosaic_0001>
module attributes {stable_mosaic.version = 11 : i64} {
  func.func @kernel(%arg0: i32, %arg1: memref<8x16xbf16, #tpu.memory_space<vmem>>, %arg2: memref<16x128xbf16, #tpu.memory_space<vmem>>, %arg3: memref<1x128xf32, #tpu.memory_space<vmem>>, %arg4: memref<128x128xbf16, #tpu.memory_space<vmem>>, %arg5: memref<1x128xf32, #tpu.memory_space<vmem>>, %arg6: memref<128x128xbf16, #tpu.memory_space<vmem>>, %arg7: memref<1x128xf32, #tpu.memory_space<vmem>>, %arg8: memref<8x128xbf16, #tpu.memory_space<vmem>>) attributes {dimension_semantics = [#tpu.dimension_semantics<parallel>], iteration_bounds = array<i64: 1>, scalar_prefetch = 0 : i64, scratch_operands = 0 : i64, tpu.core_type = #tpu.core_type<tc>, window_params = [{transform_indices = @transform_0, window_bounds = array<i64: 8, 16>}, {pipeline_mode = #tpu.pipeline_mode<synchronous>, transform_indices = @transform_1, window_bounds = array<i64: 16, 128>}, {pipeline_mode = #tpu.pipeline_mode<synchronous>, transform_indices = @transform_2, window_bounds = array<i64: 1, 128>}, {pipeline_mode = #tpu.pipeline_mode<synchronous>, transform_indices = @transform_3, window_bounds = array<i64: 128, 128>}, {pipeline_mode = #tpu.pipeline_mode<synchronous>, transform_indices = @transform_4, window_bounds = array<i64: 1, 128>}, {pipeline_mode = #tpu.pipeline_mode<synchronous>, transform_indices = @transform_5, window_bounds = array<i64: 128, 128>}, {pipeline_mode = #tpu.pipeline_mode<synchronous>, transform_indices = @transform_6, window_bounds = array<i64: 1, 128>}, {transform_indices = @transform_7, window_bounds = array<i64: 8, 128>}]} {
    %c0 = arith.constant 0 : index
    %c0_0 = arith.constant 0 : index
    %0 = vector.load %arg1[%c0, %c0_0] : memref<8x16xbf16, #tpu.memory_space<vmem>>, vector<8x16xbf16>
    %c0_1 = arith.constant 0 : index
    %c0_2 = arith.constant 0 : index
    %1 = vector.load %arg2[%c0_1, %c0_2] : memref<16x128xbf16, #tpu.memory_space<vmem>>, vector<16x128xbf16>
    %c0_3 = arith.constant 0 : index
    %c0_4 = arith.constant 0 : index
    %2 = vector.load %arg3[%c0_3, %c0_4] : memref<1x128xf32, #tpu.memory_space<vmem>>, vector<1x128xf32>
    %cst = arith.constant dense<0.000000e+00> : vector<8x128xf32>
    %3 = tpu.matmul %0, %1, %cst {dimension_numbers = #tpu.dot_dimension_numbers<[1], [0], [0], [1], [0, 0, 1, 1], [], []>} : vector<8x16xbf16>, vector<16x128xbf16>, vector<8x128xf32> -> vector<8x128xf32>
    %4 = vector.broadcast %2 : vector<1x128xf32> to vector<8x128xf32>
    %5 = arith.addf %3, %4 : vector<8x128xf32>
    %6 = math.tanh %5 : vector<8x128xf32>
    %7 = arith.truncf %6 : vector<8x128xf32> to vector<8x128xbf16>
    %c0_5 = arith.constant 0 : index
    %c0_6 = arith.constant 0 : index
    %8 = vector.load %arg4[%c0_5, %c0_6] : memref<128x128xbf16, #tpu.memory_space<vmem>>, vector<128x128xbf16>
    %c0_7 = arith.constant 0 : index
    %c0_8 = arith.constant 0 : index
    %9 = vector.load %arg5[%c0_7, %c0_8] : memref<1x128xf32, #tpu.memory_space<vmem>>, vector<1x128xf32>
    %cst_9 = arith.constant dense<0.000000e+00> : vector<8x128xf32>
    %10 = tpu.matmul %7, %8, %cst_9 {dimension_numbers = #tpu.dot_dimension_numbers<[1], [0], [0], [1], [0, 0, 1, 1], [], []>} : vector<8x128xbf16>, vector<128x128xbf16>, vector<8x128xf32> -> vector<8x128xf32>
    %11 = vector.broadcast %9 : vector<1x128xf32> to vector<8x128xf32>
    %12 = arith.addf %10, %11 : vector<8x128xf32>
    %13 = math.tanh %12 : vector<8x128xf32>
    %14 = arith.truncf %13 : vector<8x128xf32> to vector<8x128xbf16>
    %c0_10 = arith.constant 0 : index
    %c0_11 = arith.constant 0 : index
    %15 = vector.load %arg6[%c0_10, %c0_11] : memref<128x128xbf16, #tpu.memory_space<vmem>>, vector<128x128xbf16>
    %c0_12 = arith.constant 0 : index
    %c0_13 = arith.constant 0 : index
    %16 = vector.load %arg7[%c0_12, %c0_13] : memref<1x128xf32, #tpu.memory_space<vmem>>, vector<1x128xf32>
    %cst_14 = arith.constant dense<0.000000e+00> : vector<8x128xf32>
    %17 = tpu.matmul %14, %15, %cst_14 {dimension_numbers = #tpu.dot_dimension_numbers<[1], [0], [0], [1], [0, 0, 1, 1], [], []>} : vector<8x128xbf16>, vector<128x128xbf16>, vector<8x128xf32> -> vector<8x128xf32>
    %18 = vector.broadcast %16 : vector<1x128xf32> to vector<8x128xf32>
    %19 = arith.addf %17, %18 : vector<8x128xf32>
    %20 = arith.truncf %19 : vector<8x128xf32> to vector<8x128xbf16>
    %c0_15 = arith.constant 0 : index
    %c0_16 = arith.constant 0 : index
    %21 = vector.load %arg8[%c0_15, %c0_16] : memref<8x128xbf16, #tpu.memory_space<vmem>>, vector<8x128xbf16>
    tpu.vector_store %arg8[%c0_15, %c0_16], %20 {strides = array<i32>} : memref<8x128xbf16, #tpu.memory_space<vmem>>, vector<8x128xbf16>,
    return
  }
  func.func @transform_0(%arg0: i32) -> (i32, i32) {
    %c0_i32 = arith.constant 0 : i32
    %c0_i32_0 = arith.constant 0 : i32
    return %arg0, %c0_i32 : i32, i32
  }
  func.func @transform_1(%arg0: i32) -> (i32, i32) {
    %c0_i32 = arith.constant 0 : i32
    %c0_i32_0 = arith.constant 0 : i32
    %c0_i32_1 = arith.constant 0 : i32
    return %c0_i32, %c0_i32_0 : i32, i32
  }
  func.func @transform_2(%arg0: i32) -> (i32, i32) {
    %c0_i32 = arith.constant 0 : i32
    %c0_i32_0 = arith.constant 0 : i32
    %c0_i32_1 = arith.constant 0 : i32
    return %c0_i32, %c0_i32_0 : i32, i32
  }
  func.func @transform_3(%arg0: i32) -> (i32, i32) {
    %c0_i32 = arith.constant 0 : i32
    %c0_i32_0 = arith.constant 0 : i32
    %c0_i32_1 = arith.constant 0 : i32
    return %c0_i32, %c0_i32_0 : i32, i32
  }
  func.func @transform_4(%arg0: i32) -> (i32, i32) {
    %c0_i32 = arith.constant 0 : i32
    %c0_i32_0 = arith.constant 0 : i32
    %c0_i32_1 = arith.constant 0 : i32
    return %c0_i32, %c0_i32_0 : i32, i32
  }
  func.func @transform_5(%arg0: i32) -> (i32, i32) {
    %c0_i32 = arith.constant 0 : i32
    %c0_i32_0 = arith.constant 0 : i32
    %c0_i32_1 = arith.constant 0 : i32
    return %c0_i32, %c0_i32_0 : i32, i32
  }
  func.func @transform_6(%arg0: i32) -> (i32, i32) {
    %c0_i32 = arith.constant 0 : i32
    %c0_i32_0 = arith.constant 0 : i32
    %c0_i32_1 = arith.constant 0 : i32
    return %c0_i32, %c0_i32_0 : i32, i32
  }
  func.func @transform_7(%arg0: i32) -> (i32, i32) {
    %c0_i32 = arith.constant 0 : i32
    %c0_i32_0 = arith.constant 0 : i32
    return %arg0, %c0_i32 : i32, i32
  }
}

module attributes {stable_mosaic.version = 11 : i64} {
  func.func @kernel(%arg0: i32, %arg1: memref<8x16xbf16, #tpu.memory_space<vmem>>, %arg2: memref<16x128xbf16, #tpu.memory_space<vmem>>, %arg3: memref<1x128xf32, #tpu.memory_space<vmem>>, %arg4: memref<128x128xbf16, #tpu.memory_space<vmem>>, %arg5: memref<1x128xf32, #tpu.memory_space<vmem>>, %arg6: memref<128x128xbf16, #tpu.memory_space<vmem>>, %arg7: memref<1x128xf32, #tpu.memory_space<vmem>>, %arg8: memref<8x128xbf16, #tpu.memory_space<vmem>>) attributes {dimension_semantics = [#tpu.dimension_semantics<parallel>], iteration_bounds = array<i64: 1>, scalar_prefetch = 0 : i64, scratch_operands = 0 : i64, tpu.core_type = #tpu.core_type<tc>, window_params = [{transform_indices = @transform_0, window_bounds = array<i64: 8, 16>}, {pipeline_mode = #tpu.pipeline_mode<synchronous>, transform_indices = @transform_1, window_bounds = array<i64: 16, 128>}, {pipeline_mode = #tpu.pipeline_mode<synchronous>, transform_indices = @transform_2, window_bounds = array<i64: 1, 128>}, {pipeline_mode = #tpu.pipeline_mode<synchronous>, transform_indices = @transform_3, window_bounds = array<i64: 128, 128>}, {pipeline_mode = #tpu.pipeline_mode<synchronous>, transform_indices = @transform_4, window_bounds = array<i64: 1, 128>}, {pipeline_mode = #tpu.pipeline_mode<synchronous>, transform_indices = @transform_5, window_bounds = array<i64: 128, 128>}, {pipeline_mode = #tpu.pipeline_mode<synchronous>, transform_indices = @transform_6, window_bounds = array<i64: 1, 128>}, {transform_indices = @transform_7, window_bounds = array<i64: 8, 128>}]} {
    %c0 = arith.constant 0 : index
    %c0_0 = arith.constant 0 : index
    %0 = vector.load %arg1[%c0, %c0_0] : memref<8x16xbf16, #tpu.memory_space<vmem>>, vector<8x16xbf16>
    %c0_1 = arith.constant 0 : index
    %c0_2 = arith.constant 0 : index
    %1 = vector.load %arg2[%c0_1, %c0_2] : memref<16x128xbf16, #tpu.memory_space<vmem>>, vector<16x128xbf16>
    %c0_3 = arith.constant 0 : index
    %c0_4 = arith.constant 0 : index
    %2 = vector.load %arg3[%c0_3, %c0_4] : memref<1x128xf32, #tpu.memory_space<vmem>>, vector<1x128xf32>
    %cst = arith.constant dense<0.000000e+00> : vector<8x128xf32>
    %3 = tpu.matmul %0, %1, %cst {dimension_numbers = #tpu.dot_dimension_numbers<[1], [0], [0], [1], [0, 0, 1, 1], [], []>} : vector<8x16xbf16>, vector<16x128xbf16>, vector<8x128xf32> -> vector<8x128xf32>
    %4 = vector.broadcast %2 : vector<1x128xf32> to vector<8x128xf32>
    %5 = arith.addf %3, %4 : vector<8x128xf32>
    %6 = math.tanh %5 : vector<8x128xf32>
    %7 = arith.truncf %6 : vector<8x128xf32> to vector<8x128xbf16>
    %c0_5 = arith.constant 0 : index
    %c0_6 = arith.constant 0 : index
    %8 = vector.load %arg4[%c0_5, %c0_6] : memref<128x128xbf16, #tpu.memory_space<vmem>>, vector<128x128xbf16>
    %c0_7 = arith.constant 0 : index
    %c0_8 = arith.constant 0 : index
    %9 = vector.load %arg5[%c0_7, %c0_8] : memref<1x128xf32, #tpu.memory_space<vmem>>, vector<1x128xf32>
    %cst_9 = arith.constant dense<0.000000e+00> : vector<8x128xf32>
    %10 = tpu.matmul %7, %8, %cst_9 {dimension_numbers = #tpu.dot_dimension_numbers<[1], [0], [0], [1], [0, 0, 1, 1], [], []>} : vector<8x128xbf16>, vector<128x128xbf16>, vector<8x128xf32> -> vector<8x128xf32>
    %11 = vector.broadcast %9 : vector<1x128xf32> to vector<8x128xf32>
    %12 = arith.addf %10, %11 : vector<8x128xf32>
    %13 = math.tanh %12 : vector<8x128xf32>
    %14 = arith.truncf %13 : vector<8x128xf32> to vector<8x128xbf16>
    %c0_10 = arith.constant 0 : index
    %c0_11 = arith.constant 0 : index
    %15 = vector.load %arg6[%c0_10, %c0_11] : memref<128x128xbf16, #tpu.memory_space<vmem>>, vector<128x128xbf16>
    %c0_12 = arith.constant 0 : index
    %c0_13 = arith.constant 0 : index
    %16 = vector.load %arg7[%c0_12, %c0_13] : memref<1x128xf32, #tpu.memory_space<vmem>>, vector<1x128xf32>
    %cst_14 = arith.constant dense<0.000000e+00> : vector<8x128xf32>
    %17 = tpu.matmul %14, %15, %cst_14 {dimension_numbers = #tpu.dot_dimension_numbers<[1], [0], [0], [1], [0, 0, 1, 1], [], []>} : vector<8x128xbf16>, vector<128x128xbf16>, vector<8x128xf32> -> vector<8x128xf32>
    %18 = vector.broadcast %16 : vector<1x128xf32> to vector<8x128xf32>
    %19 = arith.addf %17, %18 : vector<8x128xf32>
    %20 = arith.truncf %19 : vector<8x128xf32> to vector<8x128xbf16>
    %c0_15 = arith.constant 0 : index
    %c0_16 = arith.constant 0 : index
    %21 = vector.load %arg8[%c0_15, %c0_16] : memref<8x128xbf16, #tpu.memory_space<vmem>>, vector<8x128xbf16>
    tpu.vector_store %arg8[%c0_15, %c0_16], %20 {strides = array<i32>} : memref<8x128xbf16, #tpu.memory_space<vmem>>, vector<8x128xbf16>,
    return
  }
  func.func @transform_0(%arg0: i32) -> (i32, i32) {
    %c0_i32 = arith.constant 0 : i32
    %c0_i32_0 = arith.constant 0 : i32
    return %arg0, %c0_i32 : i32, i32
  }
  func.func @transform_1(%arg0: i32) -> (i32, i32) {
    %c0_i32 = arith.constant 0 : i32
    %c0_i32_0 = arith.constant 0 : i32
    %c0_i32_1 = arith.constant 0 : i32
    return %c0_i32, %c0_i32_0 : i32, i32
  }
  func.func @transform_2(%arg0: i32) -> (i32, i32) {
    %c0_i32 = arith.constant 0 : i32
    %c0_i32_0 = arith.constant 0 : i32
    %c0_i32_1 = arith.constant 0 : i32
    return %c0_i32, %c0_i32_0 : i32, i32
  }
  func.func @transform_3(%arg0: i32) -> (i32, i32) {
    %c0_i32 = arith.constant 0 : i32
    %c0_i32_0 = arith.constant 0 : i32
    %c0_i32_1 = arith.constant 0 : i32
    return %c0_i32, %c0_i32_0 : i32, i32
  }
  func.func @transform_4(%arg0: i32) -> (i32, i32) {
    %c0_i32 = arith.constant 0 : i32
    %c0_i32_0 = arith.constant 0 : i32
    %c0_i32_1 = arith.constant 0 : i32
    return %c0_i32, %c0_i32_0 : i32, i32
  }
  func.func @transform_5(%arg0: i32) -> (i32, i32) {
    %c0_i32 = arith.constant 0 : i32
    %c0_i32_0 = arith.constant 0 : i32
    %c0_i32_1 = arith.constant 0 : i32
    return %c0_i32, %c0_i32_0 : i32, i32
  }
  func.func @transform_6(%arg0: i32) -> (i32, i32) {
    %c0_i32 = arith.constant 0 : i32
    %c0_i32_0 = arith.constant 0 : i32
    %c0_i32_1 = arith.constant 0 : i32
    return %c0_i32, %c0_i32_0 : i32, i32
  }
  func.func @transform_7(%arg0: i32) -> (i32, i32) {
    %c0_i32 = arith.constant 0 : i32
    %c0_i32_0 = arith.constant 0 : i32
    return %arg0, %c0_i32 : i32, i32
  }
}

</mosaic_0001>

<llo_original>
// kernel: tpu_custom_call.1
$region0: #{tpu_custom_call.1}
  #allocation0 [shape = 'u32[]', space=smem, size = 0x4, offset = 0x4, fixed_abs, tag = 'smem constant byte address 0x4 - core index']
  #allocation1 [shape = 'u32[72,128]{1,0:T(1,128)}', space=vmem, size = 0x9000, scoped, tag = 'internal scratch']
  %s0 = inlined_call_operand.hbm [shape: bf16[8,16], index: 0, kind: input, shape index: {}]
  %s1 = inlined_call_operand.hbm [shape: bf16[16,128], index: 1, kind: input, shape index: {}]
  %s2 = inlined_call_operand.vmem [shape: f32[1,128], index: 2, kind: input, shape index: {}]
  %s3 = inlined_call_operand.hbm [shape: bf16[128,128], index: 3, kind: input, shape index: {}]
  %s4 = inlined_call_operand.vmem [shape: f32[1,128], index: 4, kind: input, shape index: {}]
  %s5 = inlined_call_operand.hbm [shape: bf16[128,128], index: 5, kind: input, shape index: {}]
  %s6 = inlined_call_operand.vmem [shape: f32[1,128], index: 6, kind: input, shape index: {}]
  %s7 = inlined_call_operand.hbm [shape: bf16[8,128], index: 7, kind: output, shape index: {}]
  %s8 = sld [smem:[#allocation0]]
  $region54: #{tpu_custom_call.1} parent=0
    _
  %s10 = ssub.s32 1, %s8
  %s11 = scalar_select 0, %s10, %s8
  $region1: #{tpu_custom_call.1} parent=0
    #allocation2 [shape = 'u8[2048]{0}', space=vmem, size = 0x800, scoped, tag = 'input window, operand 0, single buffered']
    #allocation3 [shape = 's32[1]{0}', space=sflag, size = 0x4, scoped, tag = 'scoped memory for tpu_custom_call.1']
    #allocation4 [shape = 's32[1]{0}', space=sflag, size = 0x4, scoped, tag = 'scoped memory for tpu_custom_call.1']
    #allocation5 [shape = 'u8[4096]{0}', space=vmem, size = 0x1000, scoped, tag = 'input window, operand 1, single buffered']
    #allocation6 [shape = 's32[1]{0}', space=sflag, size = 0x4, scoped, tag = 'scoped memory for tpu_custom_call.1']
    #allocation7 [shape = 'u8[32768]{0}', space=vmem, size = 0x8000, scoped, tag = 'input window, operand 3, single buffered']
    #allocation8 [shape = 'u8[32768]{0}', space=vmem, size = 0x8000, scoped, tag = 'input window, operand 5, single buffered']
    #allocation9 [shape = 's32[1]{0}', space=sflag, size = 0x4, scoped, tag = 'scoped memory for tpu_custom_call.1']
    #allocation10 [shape = 'u8[2048]{0}', space=vmem, size = 0x800, scoped, tag = 'output window, operand 0, single buffered']
    %12 = vsyncpa [#allocation3], 0
    %13 = vsyncpa [#allocation6], 0
    %14 = vsyncpa [#allocation9], 0
    %15 = vsyncpa [#allocation4], 0
    // Predicated region
    $region2: #{tpu_custom_call.1} parent=1 // pred_check
      _
    $region3: #{tpu_custom_call.1} parent=1 // pred_check_branch
      %17 = sbr.rel (0) target = $region5
    $region4: #{tpu_custom_call.1} parent=1 // pred_region
      %19 = vsyncadd [#allocation3], 0
      %s21 = sshll.u32 %s0, 4
      %s22 = int_to_ptr.hbm [resolvable:$true] %s21
      %s23 = sshll.u32 [#allocation2], 4
      %s24 = int_to_ptr.vmem [resolvable:$true] %s23
      %26 = dma.hbm_to_vmem [thread:$0]  %s22, 64, %s24, [#allocation3]
    $region5: #{tpu_custom_call.1} parent=1 // pred_fallthru
      _
    // Predicated region
    $region6: #{tpu_custom_call.1} parent=1 // pred_check
      _
    $region7: #{tpu_custom_call.1} parent=1 // pred_check_branch
      %28 = sbr.rel (0) target = $region9
    $region8: #{tpu_custom_call.1} parent=1 // pred_region
      %30 = vsyncadd [#allocation6], 0
      %s31 = sshll.u32 %s1, 4
      %s32 = int_to_ptr.hbm [resolvable:$true] %s31
      %s33 = sshll.u32 [#allocation5], 4
      %s34 = int_to_ptr.vmem [resolvable:$true] %s33
      %39 = dma.hbm_to_vmem [thread:$0]  %s32, 128, %s34, [#allocation6], 64, 64, 4
    $region9: #{tpu_custom_call.1} parent=1 // pred_fallthru
      _
    // Predicated region
    $region10: #{tpu_custom_call.1} parent=1 // pred_check
      _
    $region11: #{tpu_custom_call.1} parent=1 // pred_check_branch
      %41 = sbr.rel (0) target = $region13
    $region12: #{tpu_custom_call.1} parent=1 // pred_region
      _
    $region13: #{tpu_custom_call.1} parent=1 // pred_fallthru
      _
    // Predicated region
    $region14: #{tpu_custom_call.1} parent=1 // pred_check
      _
    $region15: #{tpu_custom_call.1} parent=1 // pred_check_branch
      %43 = sbr.rel (0) target = $region17
    $region16: #{tpu_custom_call.1} parent=1 // pred_region
      %45 = vsyncadd [#allocation6], 0
      %s46 = sshll.u32 %s3, 4
      %s47 = int_to_ptr.hbm [resolvable:$true] %s46
      %s48 = sshll.u32 [#allocation7], 4
      %s49 = int_to_ptr.vmem [resolvable:$true] %s48
      %54 = dma.hbm_to_vmem [thread:$0]  %s47, 1024, %s49, [#allocation6], 64, 64, 4
    $region17: #{tpu_custom_call.1} parent=1 // pred_fallthru
      _
    // Predicated region
    $region18: #{tpu_custom_call.1} parent=1 // pred_check
      _
    $region19: #{tpu_custom_call.1} parent=1 // pred_check_branch
      %56 = sbr.rel (0) target = $region21
    $region20: #{tpu_custom_call.1} parent=1 // pred_region
      _
    $region21: #{tpu_custom_call.1} parent=1 // pred_fallthru
      _
    // Predicated region
    $region22: #{tpu_custom_call.1} parent=1 // pred_check
      _
    $region23: #{tpu_custom_call.1} parent=1 // pred_check_branch
      %58 = sbr.rel (0) target = $region25
    $region24: #{tpu_custom_call.1} parent=1 // pred_region
      %60 = vsyncadd [#allocation9], 0
      %s61 = sshll.u32 %s5, 4
      %s62 = int_to_ptr.hbm [resolvable:$true] %s61
      %s63 = sshll.u32 [#allocation8], 4
      %s64 = int_to_ptr.vmem [resolvable:$true] %s63
      %69 = dma.hbm_to_vmem [thread:$0]  %s62, 1024, %s64, [#allocation9], 64, 64, 4
    $region25: #{tpu_custom_call.1} parent=1 // pred_fallthru
      _
    // Predicated region
    $region26: #{tpu_custom_call.1} parent=1 // pred_check
      _
    $region27: #{tpu_custom_call.1} parent=1 // pred_check_branch
      %71 = sbr.rel (0) target = $region29
    $region28: #{tpu_custom_call.1} parent=1 // pred_region
      _
    $region29: #{tpu_custom_call.1} parent=1 // pred_fallthru
      _
    // Predicated region
    $region30: #{tpu_custom_call.1} parent=1 // pred_check
      _
    $region31: #{tpu_custom_call.1} parent=1 // pred_check_branch
      %73 = sbr.rel (0) target = $region33
    $region32: #{tpu_custom_call.1} parent=1 // pred_region
      %75 = dma.done [#allocation3], 64
    $region33: #{tpu_custom_call.1} parent=1 // pred_fallthru
      _
    // Predicated region
    $region34: #{tpu_custom_call.1} parent=1 // pred_check
      _
    $region35: #{tpu_custom_call.1} parent=1 // pred_check_branch
      %77 = sbr.rel (0) target = $region37
    $region36: #{tpu_custom_call.1} parent=1 // pred_region
      %79 = dma.done [#allocation6], 128
    $region37: #{tpu_custom_call.1} parent=1 // pred_fallthru
      _
    // Predicated region
    $region38: #{tpu_custom_call.1} parent=1 // pred_check
      _
    $region39: #{tpu_custom_call.1} parent=1 // pred_check_branch
      %81 = sbr.rel (0) target = $region41
    $region40: #{tpu_custom_call.1} parent=1 // pred_region
      %83 = dma.done [#allocation6], 1024
    $region41: #{tpu_custom_call.1} parent=1 // pred_fallthru
      _
    // Predicated region
    $region42: #{tpu_custom_call.1} parent=1 // pred_check
      _
    $region43: #{tpu_custom_call.1} parent=1 // pred_check_branch
      %85 = sbr.rel (0) target = $region45
    $region44: #{tpu_custom_call.1} parent=1 // pred_region
      %87 = dma.done [#allocation9], 1024
    $region45: #{tpu_custom_call.1} parent=1 // pred_fallthru
      _
    %v89 = vld [vmem:[#allocation2] sm:$0xf]
    %v90 = vld [vmem:[#allocation5] sm:$0xf]
    %v91 = vld [vmem:[#allocation5 + $0x4] sm:$0xf]
    %v92 = vld [vmem:[%s2] sm:$0x1]
    %v94 = vperm.slane %v92, 0
    %v98 = vunpack.c.l.b16 %v90
    %v99 = vunpack.c.l.b16 %v91
    %v100 = vpack.c.b16 %v99, %v98
    %vm102 = vcmask 130048
    %v104 = vsel %vm102, %v89, 0
    %106 = vmatpush.bf16.msra.mxu0 0
    %107 = vmatpush.bf16.msra.mxu0 0
    %108 = vmatpush.bf16.msra.mxu0 0
    %109 = vmatpush.bf16.msra.mxu0 0
    %110 = vmatpush.bf16.msra.mxu0 0
    %111 = vmatpush.bf16.msra.mxu0 0
    %112 = vmatpush.bf16.msra.mxu0 0
    %113 = vmatpush.bf16.msra.mxu0 %v100
    %114 = vmatmul.bf16.gmra.mxu0 %v104
    %v115 = vpop.f32.mrf.mxu0
    %v116 = vadd.f32 %v94, %v115
    %v117 = vpop.f32.mrf.mxu0
    %118 = vdwg.mxu0
    %v119 = vtanh.pop %v116
    %v120 = vpack.c.bf16 %v119, %v119
    %v121 = vld [vmem:[#allocation7] sm:$0xf]
    %v122 = vld [vmem:[#allocation7 + $0x4] sm:$0xf]
    %v123 = vld [vmem:[#allocation7 + $0x8] sm:$0xf]
    %v124 = vld [vmem:[#allocation7 + $0xc] sm:$0xf]
    %v125 = vld [vmem:[#allocation7 + $0x10] sm:$0xf]
    %v126 = vld [vmem:[#allocation7 + $0x14] sm:$0xf]
    %v127 = vld [vmem:[#allocation7 + $0x18] sm:$0xf]
    %v128 = vld [vmem:[#allocation7 + $0x1c] sm:$0xf]
    %v129 = vld [vmem:[#allocation7 + $0x20] sm:$0xf]
    %v130 = vld [vmem:[#allocation7 + $0x24] sm:$0xf]
    %v131 = vld [vmem:[#allocation7 + $0x28] sm:$0xf]
    %v132 = vld [vmem:[#allocation7 + $0x2c] sm:$0xf]
    %v133 = vld [vmem:[#allocation7 + $0x30] sm:$0xf]
    %v134 = vld [vmem:[#allocation7 + $0x34] sm:$0xf]
    %v135 = vld [vmem:[#allocation7 + $0x38] sm:$0xf]
    %v136 = vld [vmem:[#allocation7 + $0x3c] sm:$0xf]
    %v137 = vld [vmem:[%s4] sm:$0x1]
    %v139 = vperm.slane %v137, 0
    %v157 = vunpack.c.l.b16 %v121
    %v158 = vunpack.c.l.b16 %v122
    %v159 = vunpack.c.l.b16 %v123
    %v160 = vunpack.c.l.b16 %v124
    %v161 = vunpack.c.l.b16 %v125
    %v162 = vunpack.c.l.b16 %v126
    %v163 = vunpack.c.l.b16 %v127
    %v164 = vunpack.c.l.b16 %v128
    %v165 = vunpack.c.l.b16 %v129
    %v166 = vunpack.c.l.b16 %v130
    %v167 = vunpack.c.l.b16 %v131
    %v168 = vunpack.c.l.b16 %v132
    %v169 = vunpack.c.l.b16 %v133
    %v170 = vunpack.c.l.b16 %v134
    %v171 = vunpack.c.l.b16 %v135
    %v172 = vunpack.c.l.b16 %v136
    %v173 = vpack.c.b16 %v158, %v157
    %v174 = vpack.c.b16 %v160, %v159
    %v175 = vpack.c.b16 %v162, %v161
    %v176 = vpack.c.b16 %v164, %v163
    %v177 = vpack.c.b16 %v166, %v165
    %v178 = vpack.c.b16 %v168, %v167
    %v179 = vpack.c.b16 %v170, %v169
    %v180 = vpack.c.b16 %v172, %v171
    %189 = vmatpush.bf16.msra.mxu0 %v180
    %190 = vmatpush.bf16.msra.mxu0 %v179
    %191 = vmatpush.bf16.msra.mxu0 %v178
    %192 = vmatpush.bf16.msra.mxu0 %v177
    %193 = vmatpush.bf16.msra.mxu0 %v176
    %194 = vmatpush.bf16.msra.mxu0 %v175
    %195 = vmatpush.bf16.msra.mxu0 %v174
    %196 = vmatpush.bf16.msra.mxu0 %v173
    %197 = vmatmul.bf16.gmra.mxu0 %v120
    %v198 = vpop.f32.mrf.mxu0
    %v199 = vadd.f32 %v139, %v198
    %v200 = vpop.f32.mrf.mxu0
    %201 = vdwg.mxu0
    %v202 = vtanh.pop %v199
    %v203 = vpack.c.bf16 %v202, %v202
    %v204 = vld [vmem:[#allocation8] sm:$0xf]
    %v205 = vld [vmem:[#allocation8 + $0x4] sm:$0xf]
    %v206 = vld [vmem:[#allocation8 + $0x8] sm:$0xf]
    %v207 = vld [vmem:[#allocation8 + $0xc] sm:$0xf]
    %v208 = vld [vmem:[#allocation8 + $0x10] sm:$0xf]
    %v209 = vld [vmem:[#allocation8 + $0x14] sm:$0xf]
    %v210 = vld [vmem:[#allocation8 + $0x18] sm:$0xf]
    %v211 = vld [vmem:[#allocation8 + $0x1c] sm:$0xf]
    %v212 = vld [vmem:[#allocation8 + $0x20] sm:$0xf]
    %v213 = vld [vmem:[#allocation8 + $0x24] sm:$0xf]
    %v214 = vld [vmem:[#allocation8 + $0x28] sm:$0xf]
    %v215 = vld [vmem:[#allocation8 + $0x2c] sm:$0xf]
    %v216 = vld [vmem:[#allocation8 + $0x30] sm:$0xf]
    %v217 = vld [vmem:[#allocation8 + $0x34] sm:$0xf]
    %v218 = vld [vmem:[#allocation8 + $0x38] sm:$0xf]
    %v219 = vld [vmem:[#allocation8 + $0x3c] sm:$0xf]
    %v220 = vld [vmem:[%s6] sm:$0x1]
    %v222 = vperm.slane %v220, 0
    %v240 = vunpack.c.l.b16 %v204
    %v241 = vunpack.c.l.b16 %v205
    %v242 = vunpack.c.l.b16 %v206
    %v243 = vunpack.c.l.b16 %v207
    %v244 = vunpack.c.l.b16 %v208
    %v245 = vunpack.c.l.b16 %v209
    %v246 = vunpack.c.l.b16 %v210
    %v247 = vunpack.c.l.b16 %v211
    %v248 = vunpack.c.l.b16 %v212
    %v249 = vunpack.c.l.b16 %v213
    %v250 = vunpack.c.l.b16 %v214
    %v251 = vunpack.c.l.b16 %v215
    %v252 = vunpack.c.l.b16 %v216
    %v253 = vunpack.c.l.b16 %v217
    %v254 = vunpack.c.l.b16 %v218
    %v255 = vunpack.c.l.b16 %v219
    %v256 = vpack.c.b16 %v241, %v240
    %v257 = vpack.c.b16 %v243, %v242
    %v258 = vpack.c.b16 %v245, %v244
    %v259 = vpack.c.b16 %v247, %v246
    %v260 = vpack.c.b16 %v249, %v248
    %v261 = vpack.c.b16 %v251, %v250
    %v262 = vpack.c.b16 %v253, %v252
    %v263 = vpack.c.b16 %v255, %v254
    %272 = vmatpush.bf16.msra.mxu0 %v263
    %273 = vmatpush.bf16.msra.mxu0 %v262
    %274 = vmatpush.bf16.msra.mxu0 %v261
    %275 = vmatpush.bf16.msra.mxu0 %v260
    %276 = vmatpush.bf16.msra.mxu0 %v259
    %277 = vmatpush.bf16.msra.mxu0 %v258
    %278 = vmatpush.bf16.msra.mxu0 %v257
    %279 = vmatpush.bf16.msra.mxu0 %v256
    %280 = vmatmul.bf16.gmra.mxu0 %v203
    %v281 = vpop.f32.mrf.mxu0
    %v282 = vadd.f32 %v222, %v281
    %v283 = vpop.f32.mrf.mxu0
    %284 = vdwg.mxu0
    %v285 = vpack.c.bf16 %v282, %v282
    %286 = vst [vmem:[#allocation10] sm:$0xf] %v285
    // Predicated region
    $region46: #{tpu_custom_call.1} parent=1 // pred_check
      _
    $region47: #{tpu_custom_call.1} parent=1 // pred_check_branch
      %288 = sbr.rel (0) target = $region49
    $region48: #{tpu_custom_call.1} parent=1 // pred_region
      %290 = vsyncadd [#allocation4], 0
      %s292 = sshll.u32 [#allocation10], 4
      %s293 = int_to_ptr.vmem [resolvable:$true] %s292
      %s294 = sshll.u32 %s7, 4
      %s295 = int_to_ptr.hbm [resolvable:$true] %s294
      %297 = dma.vmem_to_hbm [thread:$0]  %s293, 64, %s295, [#allocation4]
    $region49: #{tpu_custom_call.1} parent=1 // pred_fallthru
      _
    // Predicated region
    $region50: #{tpu_custom_call.1} parent=1 // pred_check
      _
    $region51: #{tpu_custom_call.1} parent=1 // pred_check_branch
      %299 = sbr.rel (0) target = $region53
    $region52: #{tpu_custom_call.1} parent=1 // pred_region
      %301 = dma.done [#allocation4], 64
    $region53: #{tpu_custom_call.1} parent=1 // pred_fallthru
      _
    %302 = vsyncpa [#allocation3], 1
    %303 = vsyncpa [#allocation6], 1
    %304 = vsyncpa [#allocation9], 1
    %305 = vsyncpa [#allocation4], 1

// kernel: tpu_custom_call.1
$region0: #{tpu_custom_call.1}
  #allocation0 [shape = 'u32[]', space=smem, size = 0x4, offset = 0x4, fixed_abs, tag = 'smem constant byte address 0x4 - core index']
  #allocation1 [shape = 'u32[72,128]{1,0:T(1,128)}', space=vmem, size = 0x9000, scoped, tag = 'internal scratch']
  %s0 = inlined_call_operand.hbm [shape: bf16[8,16], index: 0, kind: input, shape index: {}]
  %s1 = inlined_call_operand.hbm [shape: bf16[16,128], index: 1, kind: input, shape index: {}]
  %s2 = inlined_call_operand.vmem [shape: f32[1,128], index: 2, kind: input, shape index: {}]
  %s3 = inlined_call_operand.hbm [shape: bf16[128,128], index: 3, kind: input, shape index: {}]
  %s4 = inlined_call_operand.vmem [shape: f32[1,128], index: 4, kind: input, shape index: {}]
  %s5 = inlined_call_operand.hbm [shape: bf16[128,128], index: 5, kind: input, shape index: {}]
  %s6 = inlined_call_operand.vmem [shape: f32[1,128], index: 6, kind: input, shape index: {}]
  %s7 = inlined_call_operand.hbm [shape: bf16[8,128], index: 7, kind: output, shape index: {}]
  %s8 = sld [smem:[#allocation0]]
  $region54: #{tpu_custom_call.1} parent=0
    _
  %s10 = ssub.s32 1, %s8
  %s11 = scalar_select 0, %s10, %s8
  $region1: #{tpu_custom_call.1} parent=0
    #allocation2 [shape = 'u8[2048]{0}', space=vmem, size = 0x800, scoped, tag = 'input window, operand 0, single buffered']
    #allocation3 [shape = 's32[1]{0}', space=sflag, size = 0x4, scoped, tag = 'scoped memory for tpu_custom_call.1']
    #allocation4 [shape = 's32[1]{0}', space=sflag, size = 0x4, scoped, tag = 'scoped memory for tpu_custom_call.1']
    #allocation5 [shape = 'u8[4096]{0}', space=vmem, size = 0x1000, scoped, tag = 'input window, operand 1, single buffered']
    #allocation6 [shape = 's32[1]{0}', space=sflag, size = 0x4, scoped, tag = 'scoped memory for tpu_custom_call.1']
    #allocation7 [shape = 'u8[32768]{0}', space=vmem, size = 0x8000, scoped, tag = 'input window, operand 3, single buffered']
    #allocation8 [shape = 'u8[32768]{0}', space=vmem, size = 0x8000, scoped, tag = 'input window, operand 5, single buffered']
    #allocation9 [shape = 's32[1]{0}', space=sflag, size = 0x4, scoped, tag = 'scoped memory for tpu_custom_call.1']
    #allocation10 [shape = 'u8[2048]{0}', space=vmem, size = 0x800, scoped, tag = 'output window, operand 0, single buffered']
    %12 = vsyncpa [#allocation3], 0
    %13 = vsyncpa [#allocation6], 0
    %14 = vsyncpa [#allocation9], 0
    %15 = vsyncpa [#allocation4], 0
    // Predicated region
    $region2: #{tpu_custom_call.1} parent=1 // pred_check
      _
    $region3: #{tpu_custom_call.1} parent=1 // pred_check_branch
      %17 = sbr.rel (0) target = $region5
    $region4: #{tpu_custom_call.1} parent=1 // pred_region
      %19 = vsyncadd [#allocation3], 0
      %s21 = sshll.u32 %s0, 4
      %s22 = int_to_ptr.hbm [resolvable:$true] %s21
      %s23 = sshll.u32 [#allocation2], 4
      %s24 = int_to_ptr.vmem [resolvable:$true] %s23
      %26 = dma.hbm_to_vmem [thread:$0]  %s22, 64, %s24, [#allocation3]
    $region5: #{tpu_custom_call.1} parent=1 // pred_fallthru
      _
    // Predicated region
    $region6: #{tpu_custom_call.1} parent=1 // pred_check
      _
    $region7: #{tpu_custom_call.1} parent=1 // pred_check_branch
      %28 = sbr.rel (0) target = $region9
    $region8: #{tpu_custom_call.1} parent=1 // pred_region
      %30 = vsyncadd [#allocation6], 0
      %s31 = sshll.u32 %s1, 4
      %s32 = int_to_ptr.hbm [resolvable:$true] %s31
      %s33 = sshll.u32 [#allocation5], 4
      %s34 = int_to_ptr.vmem [resolvable:$true] %s33
      %39 = dma.hbm_to_vmem [thread:$0]  %s32, 128, %s34, [#allocation6], 64, 64, 4
    $region9: #{tpu_custom_call.1} parent=1 // pred_fallthru
      _
    // Predicated region
    $region10: #{tpu_custom_call.1} parent=1 // pred_check
      _
    $region11: #{tpu_custom_call.1} parent=1 // pred_check_branch
      %41 = sbr.rel (0) target = $region13
    $region12: #{tpu_custom_call.1} parent=1 // pred_region
      _
    $region13: #{tpu_custom_call.1} parent=1 // pred_fallthru
      _
    // Predicated region
    $region14: #{tpu_custom_call.1} parent=1 // pred_check
      _
    $region15: #{tpu_custom_call.1} parent=1 // pred_check_branch
      %43 = sbr.rel (0) target = $region17
    $region16: #{tpu_custom_call.1} parent=1 // pred_region
      %45 = vsyncadd [#allocation6], 0
      %s46 = sshll.u32 %s3, 4
      %s47 = int_to_ptr.hbm [resolvable:$true] %s46
      %s48 = sshll.u32 [#allocation7], 4
      %s49 = int_to_ptr.vmem [resolvable:$true] %s48
      %54 = dma.hbm_to_vmem [thread:$0]  %s47, 1024, %s49, [#allocation6], 64, 64, 4
    $region17: #{tpu_custom_call.1} parent=1 // pred_fallthru
      _
    // Predicated region
    $region18: #{tpu_custom_call.1} parent=1 // pred_check
      _
    $region19: #{tpu_custom_call.1} parent=1 // pred_check_branch
      %56 = sbr.rel (0) target = $region21
    $region20: #{tpu_custom_call.1} parent=1 // pred_region
      _
    $region21: #{tpu_custom_call.1} parent=1 // pred_fallthru
      _
    // Predicated region
    $region22: #{tpu_custom_call.1} parent=1 // pred_check
      _
    $region23: #{tpu_custom_call.1} parent=1 // pred_check_branch
      %58 = sbr.rel (0) target = $region25
    $region24: #{tpu_custom_call.1} parent=1 // pred_region
      %60 = vsyncadd [#allocation9], 0
      %s61 = sshll.u32 %s5, 4
      %s62 = int_to_ptr.hbm [resolvable:$true] %s61
      %s63 = sshll.u32 [#allocation8], 4
      %s64 = int_to_ptr.vmem [resolvable:$true] %s63
      %69 = dma.hbm_to_vmem [thread:$0]  %s62, 1024, %s64, [#allocation9], 64, 64, 4
    $region25: #{tpu_custom_call.1} parent=1 // pred_fallthru
      _
    // Predicated region
    $region26: #{tpu_custom_call.1} parent=1 // pred_check
      _
    $region27: #{tpu_custom_call.1} parent=1 // pred_check_branch
      %71 = sbr.rel (0) target = $region29
    $region28: #{tpu_custom_call.1} parent=1 // pred_region
      _
    $region29: #{tpu_custom_call.1} parent=1 // pred_fallthru
      _
    // Predicated region
    $region30: #{tpu_custom_call.1} parent=1 // pred_check
      _
    $region31: #{tpu_custom_call.1} parent=1 // pred_check_branch
      %73 = sbr.rel (0) target = $region33
    $region32: #{tpu_custom_call.1} parent=1 // pred_region
      %75 = dma.done [#allocation3], 64
    $region33: #{tpu_custom_call.1} parent=1 // pred_fallthru
      _
    // Predicated region
    $region34: #{tpu_custom_call.1} parent=1 // pred_check
      _
    $region35: #{tpu_custom_call.1} parent=1 // pred_check_branch
      %77 = sbr.rel (0) target = $region37
    $region36: #{tpu_custom_call.1} parent=1 // pred_region
      %79 = dma.done [#allocation6], 128
    $region37: #{tpu_custom_call.1} parent=1 // pred_fallthru
      _
    // Predicated region
    $region38: #{tpu_custom_call.1} parent=1 // pred_check
      _
    $region39: #{tpu_custom_call.1} parent=1 // pred_check_branch
      %81 = sbr.rel (0) target = $region41
    $region40: #{tpu_custom_call.1} parent=1 // pred_region
      %83 = dma.done [#allocation6], 1024
    $region41: #{tpu_custom_call.1} parent=1 // pred_fallthru
      _
    // Predicated region
    $region42: #{tpu_custom_call.1} parent=1 // pred_check
      _
    $region43: #{tpu_custom_call.1} parent=1 // pred_check_branch
      %85 = sbr.rel (0) target = $region45
    $region44: #{tpu_custom_call.1} parent=1 // pred_region
      %87 = dma.done [#allocation9], 1024
    $region45: #{tpu_custom_call.1} parent=1 // pred_fallthru
      _
    %v89 = vld [vmem:[#allocation2] sm:$0xf]
    %v90 = vld [vmem:[#allocation5] sm:$0xf]
    %v91 = vld [vmem:[#allocation5 + $0x4] sm:$0xf]
    %v92 = vld [vmem:[%s2] sm:$0x1]
    %v94 = vperm.slane %v92, 0
    %v98 = vunpack.c.l.b16 %v90
    %v99 = vunpack.c.l.b16 %v91
    %v100 = vpack.c.b16 %v99, %v98
    %vm102 = vcmask 130048
    %v104 = vsel %vm102, %v89, 0
    %106 = vmatpush.bf16.msra.mxu0 0
    %107 = vmatpush.bf16.msra.mxu0 0
    %108 = vmatpush.bf16.msra.mxu0 0
    %109 = vmatpush.bf16.msra.mxu0 0
    %110 = vmatpush.bf16.msra.mxu0 0
    %111 = vmatpush.bf16.msra.mxu0 0
    %112 = vmatpush.bf16.msra.mxu0 0
    %113 = vmatpush.bf16.msra.mxu0 %v100
    %114 = vmatmul.bf16.gmra.mxu0 %v104
    %v115 = vpop.f32.mrf.mxu0
    %v116 = vadd.f32 %v94, %v115
    %v117 = vpop.f32.mrf.mxu0
    %118 = vdwg.mxu0
    %v119 = vtanh.pop %v116
    %v120 = vpack.c.bf16 %v119, %v119
    %v121 = vld [vmem:[#allocation7] sm:$0xf]
    %v122 = vld [vmem:[#allocation7 + $0x4] sm:$0xf]
    %v123 = vld [vmem:[#allocation7 + $0x8] sm:$0xf]
    %v124 = vld [vmem:[#allocation7 + $0xc] sm:$0xf]
    %v125 = vld [vmem:[#allocation7 + $0x10] sm:$0xf]
    %v126 = vld [vmem:[#allocation7 + $0x14] sm:$0xf]
    %v127 = vld [vmem:[#allocation7 + $0x18] sm:$0xf]
    %v128 = vld [vmem:[#allocation7 + $0x1c] sm:$0xf]
    %v129 = vld [vmem:[#allocation7 + $0x20] sm:$0xf]
    %v130 = vld [vmem:[#allocation7 + $0x24] sm:$0xf]
    %v131 = vld [vmem:[#allocation7 + $0x28] sm:$0xf]
    %v132 = vld [vmem:[#allocation7 + $0x2c] sm:$0xf]
    %v133 = vld [vmem:[#allocation7 + $0x30] sm:$0xf]
    %v134 = vld [vmem:[#allocation7 + $0x34] sm:$0xf]
    %v135 = vld [vmem:[#allocation7 + $0x38] sm:$0xf]
    %v136 = vld [vmem:[#allocation7 + $0x3c] sm:$0xf]
    %v137 = vld [vmem:[%s4] sm:$0x1]
    %v139 = vperm.slane %v137, 0
    %v157 = vunpack.c.l.b16 %v121
    %v158 = vunpack.c.l.b16 %v122
    %v159 = vunpack.c.l.b16 %v123
    %v160 = vunpack.c.l.b16 %v124
    %v161 = vunpack.c.l.b16 %v125
    %v162 = vunpack.c.l.b16 %v126
    %v163 = vunpack.c.l.b16 %v127
    %v164 = vunpack.c.l.b16 %v128
    %v165 = vunpack.c.l.b16 %v129
    %v166 = vunpack.c.l.b16 %v130
    %v167 = vunpack.c.l.b16 %v131
    %v168 = vunpack.c.l.b16 %v132
    %v169 = vunpack.c.l.b16 %v133
    %v170 = vunpack.c.l.b16 %v134
    %v171 = vunpack.c.l.b16 %v135
    %v172 = vunpack.c.l.b16 %v136
    %v173 = vpack.c.b16 %v158, %v157
    %v174 = vpack.c.b16 %v160, %v159
    %v175 = vpack.c.b16 %v162, %v161
    %v176 = vpack.c.b16 %v164, %v163
    %v177 = vpack.c.b16 %v166, %v165
    %v178 = vpack.c.b16 %v168, %v167
    %v179 = vpack.c.b16 %v170, %v169
    %v180 = vpack.c.b16 %v172, %v171
    %189 = vmatpush.bf16.msra.mxu0 %v180
    %190 = vmatpush.bf16.msra.mxu0 %v179
    %191 = vmatpush.bf16.msra.mxu0 %v178
    %192 = vmatpush.bf16.msra.mxu0 %v177
    %193 = vmatpush.bf16.msra.mxu0 %v176
    %194 = vmatpush.bf16.msra.mxu0 %v175
    %195 = vmatpush.bf16.msra.mxu0 %v174
    %196 = vmatpush.bf16.msra.mxu0 %v173
    %197 = vmatmul.bf16.gmra.mxu0 %v120
    %v198 = vpop.f32.mrf.mxu0
    %v199 = vadd.f32 %v139, %v198
    %v200 = vpop.f32.mrf.mxu0
    %201 = vdwg.mxu0
    %v202 = vtanh.pop %v199
    %v203 = vpack.c.bf16 %v202, %v202
    %v204 = vld [vmem:[#allocation8] sm:$0xf]
    %v205 = vld [vmem:[#allocation8 + $0x4] sm:$0xf]
    %v206 = vld [vmem:[#allocation8 + $0x8] sm:$0xf]
    %v207 = vld [vmem:[#allocation8 + $0xc] sm:$0xf]
    %v208 = vld [vmem:[#allocation8 + $0x10] sm:$0xf]
    %v209 = vld [vmem:[#allocation8 + $0x14] sm:$0xf]
    %v210 = vld [vmem:[#allocation8 + $0x18] sm:$0xf]
    %v211 = vld [vmem:[#allocation8 + $0x1c] sm:$0xf]
    %v212 = vld [vmem:[#allocation8 + $0x20] sm:$0xf]
    %v213 = vld [vmem:[#allocation8 + $0x24] sm:$0xf]
    %v214 = vld [vmem:[#allocation8 + $0x28] sm:$0xf]
    %v215 = vld [vmem:[#allocation8 + $0x2c] sm:$0xf]
    %v216 = vld [vmem:[#allocation8 + $0x30] sm:$0xf]
    %v217 = vld [vmem:[#allocation8 + $0x34] sm:$0xf]
    %v218 = vld [vmem:[#allocation8 + $0x38] sm:$0xf]
    %v219 = vld [vmem:[#allocation8 + $0x3c] sm:$0xf]
    %v220 = vld [vmem:[%s6] sm:$0x1]
    %v222 = vperm.slane %v220, 0
    %v240 = vunpack.c.l.b16 %v204
    %v241 = vunpack.c.l.b16 %v205
    %v242 = vunpack.c.l.b16 %v206
    %v243 = vunpack.c.l.b16 %v207
    %v244 = vunpack.c.l.b16 %v208
    %v245 = vunpack.c.l.b16 %v209
    %v246 = vunpack.c.l.b16 %v210
    %v247 = vunpack.c.l.b16 %v211
    %v248 = vunpack.c.l.b16 %v212
    %v249 = vunpack.c.l.b16 %v213
    %v250 = vunpack.c.l.b16 %v214
    %v251 = vunpack.c.l.b16 %v215
    %v252 = vunpack.c.l.b16 %v216
    %v253 = vunpack.c.l.b16 %v217
    %v254 = vunpack.c.l.b16 %v218
    %v255 = vunpack.c.l.b16 %v219
    %v256 = vpack.c.b16 %v241, %v240
    %v257 = vpack.c.b16 %v243, %v242
    %v258 = vpack.c.b16 %v245, %v244
    %v259 = vpack.c.b16 %v247, %v246
    %v260 = vpack.c.b16 %v249, %v248
    %v261 = vpack.c.b16 %v251, %v250
    %v262 = vpack.c.b16 %v253, %v252
    %v263 = vpack.c.b16 %v255, %v254
    %272 = vmatpush.bf16.msra.mxu0 %v263
    %273 = vmatpush.bf16.msra.mxu0 %v262
    %274 = vmatpush.bf16.msra.mxu0 %v261
    %275 = vmatpush.bf16.msra.mxu0 %v260
    %276 = vmatpush.bf16.msra.mxu0 %v259
    %277 = vmatpush.bf16.msra.mxu0 %v258
    %278 = vmatpush.bf16.msra.mxu0 %v257
    %279 = vmatpush.bf16.msra.mxu0 %v256
    %280 = vmatmul.bf16.gmra.mxu0 %v203
    %v281 = vpop.f32.mrf.mxu0
    %v282 = vadd.f32 %v222, %v281
    %v283 = vpop.f32.mrf.mxu0
    %284 = vdwg.mxu0
    %v285 = vpack.c.bf16 %v282, %v282
    %286 = vst [vmem:[#allocation10] sm:$0xf] %v285
    // Predicated region
    $region46: #{tpu_custom_call.1} parent=1 // pred_check
      _
    $region47: #{tpu_custom_call.1} parent=1 // pred_check_branch
      %288 = sbr.rel (0) target = $region49
    $region48: #{tpu_custom_call.1} parent=1 // pred_region
      %290 = vsyncadd [#allocation4], 0
      %s292 = sshll.u32 [#allocation10], 4
      %s293 = int_to_ptr.vmem [resolvable:$true] %s292
      %s294 = sshll.u32 %s7, 4
      %s295 = int_to_ptr.hbm [resolvable:$true] %s294
      %297 = dma.vmem_to_hbm [thread:$0]  %s293, 64, %s295, [#allocation4]
    $region49: #{tpu_custom_call.1} parent=1 // pred_fallthru
      _
    // Predicated region
    $region50: #{tpu_custom_call.1} parent=1 // pred_check
      _
    $region51: #{tpu_custom_call.1} parent=1 // pred_check_branch
      %299 = sbr.rel (0) target = $region53
    $region52: #{tpu_custom_call.1} parent=1 // pred_region
      %301 = dma.done [#allocation4], 64
    $region53: #{tpu_custom_call.1} parent=1 // pred_fallthru
      _
    %302 = vsyncpa [#allocation3], 1
    %303 = vsyncpa [#allocation6], 1
    %304 = vsyncpa [#allocation9], 1
    %305 = vsyncpa [#allocation4], 1

</llo_original>
